<compile_context>
chip_gen: v6e
topology: v6e:2x2x1
jax: 0.10.0
libtpu: 0.0.40
codegen_flags: <defaults>
</compile_context>

<pallas_src>
import numpy as np
import jax
import jax.numpy as jnp
from jax.experimental import pallas as pl
from jax.experimental.pallas import tpu as pltpu

S, B, C = 7, 2, 20
D = C + 5 * B            # 30 channels per cell
DP = 32                  # channel count padded to a sublane multiple
LAMBDA_OBJ = 0.5
LAMBDA_COORD = 5.0
IOU_EPS = 1e-6
WH_EPS = 1e-6

# Packed channel order (rows of the (32, cells) channel-major arrays):
#   0:20   classes
#   20     conf1 (pred) / objectness 'exists' (target)
#   21     conf2 (pred)
#   22:24  zero padding
#   24:28  box1 x,y,w,h (pred)  /  target box x,y,w,h
#   28:32  box2 x,y,w,h (pred)
_PACK_PERM = np.array(
    list(range(20)) + [20, 25, 30, 30] + [21, 22, 23, 24] + [26, 27, 28, 29],
    dtype=np.int32)


def _sign(x):
    return jnp.where(x > 0.0, 1.0, jnp.where(x < 0.0, -1.0, 0.0))


# -----------------------------------------------------------------------------
# Pallas kernel (channel-major, lane-dense over cells)
# -----------------------------------------------------------------------------
def _corners(box):
    # box: (4, TR) rows = x, y, w, h (midpoint format) -> corner coords + |area|
    x, y, w, h = box[0:1, :], box[1:2, :], box[2:3, :], box[3:4, :]
    x1 = x - 0.5 * w
    y1 = y - 0.5 * h
    x2 = x + 0.5 * w
    y2 = y + 0.5 * h
    area = jnp.abs((x2 - x1) * (y2 - y1))
    return x1, y1, x2, y2, area


def yolo_loss_kernel(pred_ref, targ_ref, loss_ref, acc_ref):
    i = pl.program_id(0)

    @pl.when(i == 0)
    def _():
        acc_ref[...] = jnp.zeros_like(acc_ref)

    p = pred_ref[...]          # (32, TR) f32
    t = targ_ref[...]          # (32, TR) f32

    exists = t[20:21, :]       # (1, TR) objectness indicator

    # ---- bestbox via IoU ranking (target corners hoisted & shared) ----
    tx1, ty1, tx2, ty2, t_area = _corners(t[24:28, :])

    def inter_and_area(pbox):
        px1, py1, px2, py2, p_area = _corners(pbox)
        iw = jnp.maximum(jnp.minimum(px2, tx2) - jnp.maximum(px1, tx1), 0.0)
        ih = jnp.maximum(jnp.minimum(py2, ty2) - jnp.maximum(py1, ty1), 0.0)
        return iw * ih, p_area

    inter1, area1 = inter_and_area(p[24:28, :])
    inter2, area2 = inter_and_area(p[28:32, :])
    denom1 = area1 + t_area - inter1 + IOU_EPS
    denom2 = area2 + t_area - inter2 + IOU_EPS
    # iou2 > iou1  <=>  inter2*denom1 > inter1*denom2  (denominators are > 0);
    # this avoids any divide / reciprocal entirely and matches the exact ranking.
    best = (inter2 * denom1 > inter1 * denom2).astype(jnp.float32)   # (1, TR)

    # ---- fused residuals (all full-lane-width) ----
    sel_box = best * p[28:32, :] + (1.0 - best) * p[24:28, :]        # (4, TR)
    box_p = exists * sel_box
    box_t = exists * t[24:28, :]

    res_xy = box_p[0:2, :] - box_t[0:2, :]                           # (2, TR)
    bp_wh = _sign(box_p[2:4, :]) * jnp.sqrt(jnp.abs(box_p[2:4, :] + WH_EPS))
    bt_wh = jnp.sqrt(box_t[2:4, :])
    res_wh = bp_wh - bt_wh                                           # (2, TR)

    pred_conf = best * p[21:22, :] + (1.0 - best) * p[20:21, :]
    res_conf = exists * (pred_conf - t[20:21, :])                    # (1, TR)
    res_cls = exists * (p[0:20, :] - t[0:20, :])                     # (20, TR)

    # no_object_loss of the reference is mse(x, x) == 0 identically; omitted.
    # TODO(synk): not reproduced bit-for-bit under NaN/Inf predictions (the reference
    # would propagate NaN); the reference's debug print(target[:, 21:25]) is also skipped.

    # ---- per-lane accumulation (pure VPU in steady state) ----
    acc_ref[0:20, :] += res_cls * res_cls                            # class loss (w = 1)
    acc_ref[20:21, :] += res_conf * res_conf                         # object loss (w = 1)
    acc_ref[21:23, :] += LAMBDA_COORD * (res_xy * res_xy)            # box xy loss
    acc_ref[23:25, :] += LAMBDA_COORD * (res_wh * res_wh)            # box wh loss

    # ---- single deferred reduction + scalar store ----
    @pl.when(i == pl.num_programs(0) - 1)
    def _():
        loss_ref[0, 0] = jnp.sum(acc_ref[...])


# -----------------------------------------------------------------------------
# Wrapper
# -----------------------------------------------------------------------------
def _pack_channel_major(x2, r_pad):
    """(R, 30) cell-major -> (32, r_pad) channel-major in the packed channel order."""
    r = x2.shape[0]
    x2 = jnp.pad(x2, ((0, r_pad - r), (0, 1)))       # pad cells; channel 30 is a zero column
    return jnp.transpose(x2[:, _PACK_PERM])          # (32, r_pad)


def yolo_loss(predictions, target, s=S, b=B, c=C, tile_cells=2048):
    d = c + 5 * b
    preds = jnp.asarray(predictions, jnp.float32).reshape(-1, s, s, d)
    targ = jnp.asarray(target, jnp.float32).reshape(-1, s, s, d)
    n = preds.shape[0]
    r = n * s * s
    p2 = preds.reshape(r, d)
    t2 = targ.reshape(r, d)

    # Tile the cell axis: lane-aligned tiles, ~256 KiB/tile/input at TR=2048 (fits the
    # scoped-VMEM budget of v5e/v6e/v7x with double buffering to spare).
    if r <= tile_cells:
        tr = max(128, ((r + 127) // 128) * 128)
        r_pad = tr
    else:
        tr = tile_cells
        r_pad = ((r + tr - 1) // tr) * tr
    num_tiles = r_pad // tr

    # TODO(synk): the channel-major packing is done by XLA outside the kernel (one extra
    # HBM round-trip); an in-kernel (TR, 32)->(32, TR) transpose would remove it.
    p_cm = _pack_channel_major(p2, r_pad)
    t_cm = _pack_channel_major(t2, r_pad)

    out = pl.pallas_call(
        yolo_loss_kernel,
        out_shape=jax.ShapeDtypeStruct((1, 1), jnp.float32),
        grid_spec=pltpu.PrefetchScalarGridSpec(
            num_scalar_prefetch=0,
            grid=(num_tiles,),
            in_specs=[
                pl.BlockSpec((DP, tr), lambda i: (0, i)),
                pl.BlockSpec((DP, tr), lambda i: (0, i)),
            ],
            out_specs=pl.BlockSpec((1, 1), lambda i: (0, 0),
                                   memory_space=pltpu.MemorySpace.SMEM),
            scratch_shapes=[pltpu.VMEM((DP, tr), jnp.float32)],
        ),
        compiler_params=pltpu.CompilerParams(
            dimension_semantics=("arbitrary",)),
    )(p_cm, t_cm)
    return out[0, 0]


# -----------------------------------------------------------------------------
# Pure-JAX reference (literal translation of the PyTorch module, for validation)
# -----------------------------------------------------------------------------
def _iou_midpoint(b1, b2):
    b1_x1 = b1[:, 0:1] - b1[:, 2:3] * 0.5
    b1_y1 = b1[:, 1:2] - b1[:, 3:4] * 0.5
    b1_x2 = b1[:, 0:1] + b1[:, 2:3] * 0.5
    b1_y2 = b1[:, 1:2] + b1[:, 3:4] * 0.5
    b2_x1 = b2[:, 0:1] - b2[:, 2:3] * 0.5
    b2_y1 = b2[:, 1:2] - b2[:, 3:4] * 0.5
    b2_x2 = b2[:, 0:1] + b2[:, 2:3] * 0.5
    b2_y2 = b2[:, 1:2] + b2[:, 3:4] * 0.5

    x1 = jnp.maximum(b1_x1, b2_x1)
    y1 = jnp.maximum(b1_y1, b2_y1)
    x2 = jnp.minimum(b1_x2, b2_x2)
    y2 = jnp.minimum(b1_y2, b2_y2)

    inter = jnp.maximum(x2 - x1, 0.0) * jnp.maximum(y2 - y1, 0.0)
    area1 = jnp.abs((b1_x2 - b1_x1) * (b1_y2 - b1_y1))
    area2 = jnp.abs((b2_x2 - b2_x1) * (b2_y2 - b2_y1))
    return inter / (area1 + area2 - inter + IOU_EPS)


def _loss_ref_math(p, t):
    pb1 = p[:, 21:25]
    pb2 = p[:, 26:30]
    tb = t[:, 21:25]

    iou1 = _iou_midpoint(pb1, tb)
    iou2 = _iou_midpoint(pb2, tb)
    bestbox = (iou2 > iou1).astype(jnp.float32)      # torch.max returns index 0 on ties
    exists = t[:, 20:21]

    box_preds = exists * (bestbox * pb2 + (1.0 - bestbox) * pb1)
    box_targets = exists * tb
    bp_xy = box_preds[:, 0:2]
    bp_wh = _sign(box_preds[:, 2:4]) * jnp.sqrt(jnp.abs(box_preds[:, 2:4] + WH_EPS))
    bt_xy = box_targets[:, 0:2]
    bt_wh = jnp.sqrt(box_targets[:, 2:4])
    box_loss = jnp.sum((bp_xy - bt_xy) ** 2) + jnp.sum((bp_wh - bt_wh) ** 2)

    pred_conf = bestbox * p[:, 25:26] + (1.0 - bestbox) * p[:, 20:21]
    object_loss = jnp.sum((exists * pred_conf - exists * t[:, 20:21]) ** 2)

    no_obj_a = (1.0 - exists) * p[:, 20:21]
    no_obj_b = (1.0 - exists) * p[:, 25:26]
    no_object_loss = jnp.sum((no_obj_a - no_obj_a) ** 2) + jnp.sum((no_obj_b - no_obj_b) ** 2)

    class_loss = jnp.sum((exists * p[:, 0:20] - exists * t[:, 0:20]) ** 2)

    return (LAMBDA_COORD * box_loss
            + object_loss
            + LAMBDA_OBJ * no_object_loss
            + class_loss)


def yolo_loss_ref(predictions, target, s=S, b=B, c=C):
    d = c + b * 5
    preds = jnp.asarray(predictions, jnp.float32).reshape(-1, s, s, d)
    targ = jnp.asarray(target, jnp.float32).reshape(-1, s, s, d)
    n = preds.shape[0]
    return _loss_ref_math(preds.reshape(n * s * s, d), targ.reshape(n * s * s, d))


if __name__ == "__main__":
    key = jax.random.PRNGKey(0)
    k1, k2, k3 = jax.random.split(key, 3)

    N = 2
    # predictions arrive flattened per image, as the module's reshape(-1, S, S, 30) implies
    predictions = jax.random.uniform(k1, (N, S * S * D), dtype=jnp.float32)
    target = jax.random.uniform(k2, (N, S, S, D), dtype=jnp.float32)
    exists = (jax.random.uniform(k3, (N, S, S)) > 0.5).astype(jnp.float32)
    target = target.at[..., 20].set(exists)   # objectness indicator is 0/1

    loss = jax.block_until_ready(yolo_loss(predictions, target))
    ref = jax.block_until_ready(yolo_loss_ref(predictions, target))

    np.testing.assert_allclose(np.asarray(loss), np.asarray(ref), rtol=1e-3, atol=1e-3)
    print("KERNEL_OK")
</pallas_src>

<mosaic_0001>
module attributes {stable_mosaic.version = 11 : i64} {
  func.func @yolo_loss_kernel(%arg0: i32, %arg1: memref<32x128xf32, #tpu.memory_space<vmem>>, %arg2: memref<32x128xf32, #tpu.memory_space<vmem>>, %arg3: memref<1x1xf32, #tpu.memory_space<smem>>, %arg4: memref<32x128xf32, #tpu.memory_space<vmem>>) attributes {dimension_semantics = [#tpu.dimension_semantics<arbitrary>], iteration_bounds = array<i64: 1>, scalar_prefetch = 0 : i64, scratch_operands = 1 : i64, tpu.core_type = #tpu.core_type<tc>, window_params = [{transform_indices = @transform_0, window_bounds = array<i64: 32, 128>}, {transform_indices = @transform_1, window_bounds = array<i64: 32, 128>}, {transform_indices = @transform_2, window_bounds = array<i64: 1, 1>}]} {
    %c0_i32 = arith.constant 0 : i32
    %0 = arith.cmpi eq, %arg0, %c0_i32 : i32
    %1 = arith.extui %0 : i1 to i32
    %c0_i32_0 = arith.constant 0 : i32
    %2 = arith.cmpi ne, %1, %c0_i32_0 : i32
    scf.if %2 {
      %cst_46 = arith.constant 0.000000e+00 : f32
      %178 = vector.broadcast %cst_46 : f32 to vector<32x128xf32>
      %c0_47 = arith.constant 0 : index
      %c0_48 = arith.constant 0 : index
      %179 = vector.load %arg4[%c0_47, %c0_48] : memref<32x128xf32, #tpu.memory_space<vmem>>, vector<32x128xf32>
      tpu.vector_store %arg4[%c0_47, %c0_48], %178 {strides = array<i32>} : memref<32x128xf32, #tpu.memory_space<vmem>>, vector<32x128xf32>,
    } else {
    }
    %c0 = arith.constant 0 : index
    %c0_1 = arith.constant 0 : index
    %3 = vector.load %arg1[%c0, %c0_1] : memref<32x128xf32, #tpu.memory_space<vmem>>, vector<32x128xf32>
    %c0_2 = arith.constant 0 : index
    %c0_3 = arith.constant 0 : index
    %4 = vector.load %arg2[%c0_2, %c0_3] : memref<32x128xf32, #tpu.memory_space<vmem>>, vector<32x128xf32>
    %5 = vector.extract_strided_slice %4 {offsets = [20, 0], sizes = [1, 128], strides = [1, 1]} : vector<32x128xf32> to vector<1x128xf32>
    %6 = vector.extract_strided_slice %4 {offsets = [24, 0], sizes = [4, 128], strides = [1, 1]} : vector<32x128xf32> to vector<4x128xf32>
    %7 = vector.extract_strided_slice %6 {offsets = [0, 0], sizes = [1, 128], strides = [1, 1]} : vector<4x128xf32> to vector<1x128xf32>
    %8 = vector.extract_strided_slice %6 {offsets = [1, 0], sizes = [1, 128], strides = [1, 1]} : vector<4x128xf32> to vector<1x128xf32>
    %9 = vector.extract_strided_slice %6 {offsets = [2, 0], sizes = [1, 128], strides = [1, 1]} : vector<4x128xf32> to vector<1x128xf32>
    %10 = vector.extract_strided_slice %6 {offsets = [3, 0], sizes = [1, 128], strides = [1, 1]} : vector<4x128xf32> to vector<1x128xf32>
    %cst = arith.constant 5.000000e-01 : f32
    %11 = vector.broadcast %cst : f32 to vector<1x128xf32>
    %12 = arith.mulf %11, %9 : vector<1x128xf32>
    %13 = arith.subf %7, %12 : vector<1x128xf32>
    %cst_4 = arith.constant 5.000000e-01 : f32
    %14 = vector.broadcast %cst_4 : f32 to vector<1x128xf32>
    %15 = arith.mulf %14, %10 : vector<1x128xf32>
    %16 = arith.subf %8, %15 : vector<1x128xf32>
    %cst_5 = arith.constant 5.000000e-01 : f32
    %17 = vector.broadcast %cst_5 : f32 to vector<1x128xf32>
    %18 = arith.mulf %17, %9 : vector<1x128xf32>
    %19 = arith.addf %7, %18 : vector<1x128xf32>
    %cst_6 = arith.constant 5.000000e-01 : f32
    %20 = vector.broadcast %cst_6 : f32 to vector<1x128xf32>
    %21 = arith.mulf %20, %10 : vector<1x128xf32>
    %22 = arith.addf %8, %21 : vector<1x128xf32>
    %23 = arith.subf %19, %13 : vector<1x128xf32>
    %24 = arith.subf %22, %16 : vector<1x128xf32>
    %25 = arith.mulf %23, %24 : vector<1x128xf32>
    %26 = math.absf %25 : vector<1x128xf32>
    %27 = vector.extract_strided_slice %3 {offsets = [24, 0], sizes = [4, 128], strides = [1, 1]} : vector<32x128xf32> to vector<4x128xf32>
    %28 = vector.extract_strided_slice %27 {offsets = [0, 0], sizes = [1, 128], strides = [1, 1]} : vector<4x128xf32> to vector<1x128xf32>
    %29 = vector.extract_strided_slice %27 {offsets = [1, 0], sizes = [1, 128], strides = [1, 1]} : vector<4x128xf32> to vector<1x128xf32>
    %30 = vector.extract_strided_slice %27 {offsets = [2, 0], sizes = [1, 128], strides = [1, 1]} : vector<4x128xf32> to vector<1x128xf32>
    %31 = vector.extract_strided_slice %27 {offsets = [3, 0], sizes = [1, 128], strides = [1, 1]} : vector<4x128xf32> to vector<1x128xf32>
    %cst_7 = arith.constant 5.000000e-01 : f32
    %32 = vector.broadcast %cst_7 : f32 to vector<1x128xf32>
    %33 = arith.mulf %32, %30 : vector<1x128xf32>
    %34 = arith.subf %28, %33 : vector<1x128xf32>
    %cst_8 = arith.constant 5.000000e-01 : f32
    %35 = vector.broadcast %cst_8 : f32 to vector<1x128xf32>
    %36 = arith.mulf %35, %31 : vector<1x128xf32>
    %37 = arith.subf %29, %36 : vector<1x128xf32>
    %cst_9 = arith.constant 5.000000e-01 : f32
    %38 = vector.broadcast %cst_9 : f32 to vector<1x128xf32>
    %39 = arith.mulf %38, %30 : vector<1x128xf32>
    %40 = arith.addf %28, %39 : vector<1x128xf32>
    %cst_10 = arith.constant 5.000000e-01 : f32
    %41 = vector.broadcast %cst_10 : f32 to vector<1x128xf32>
    %42 = arith.mulf %41, %31 : vector<1x128xf32>
    %43 = arith.addf %29, %42 : vector<1x128xf32>
    %44 = arith.subf %40, %34 : vector<1x128xf32>
    %45 = arith.subf %43, %37 : vector<1x128xf32>
    %46 = arith.mulf %44, %45 : vector<1x128xf32>
    %47 = math.absf %46 : vector<1x128xf32>
    %48 = arith.minimumf %40, %19 : vector<1x128xf32>
    %49 = arith.maximumf %34, %13 : vector<1x128xf32>
    %50 = arith.subf %48, %49 : vector<1x128xf32>
    %cst_11 = arith.constant 0.000000e+00 : f32
    %51 = vector.broadcast %cst_11 : f32 to vector<1x128xf32>
    %52 = arith.maximumf %50, %51 : vector<1x128xf32>
    %53 = arith.minimumf %43, %22 : vector<1x128xf32>
    %54 = arith.maximumf %37, %16 : vector<1x128xf32>
    %55 = arith.subf %53, %54 : vector<1x128xf32>
    %cst_12 = arith.constant 0.000000e+00 : f32
    %56 = vector.broadcast %cst_12 : f32 to vector<1x128xf32>
    %57 = arith.maximumf %55, %56 : vector<1x128xf32>
    %58 = arith.mulf %52, %57 : vector<1x128xf32>
    %59 = vector.extract_strided_slice %3 {offsets = [28, 0], sizes = [4, 128], strides = [1, 1]} : vector<32x128xf32> to vector<4x128xf32>
    %60 = vector.extract_strided_slice %59 {offsets = [0, 0], sizes = [1, 128], strides = [1, 1]} : vector<4x128xf32> to vector<1x128xf32>
    %61 = vector.extract_strided_slice %59 {offsets = [1, 0], sizes = [1, 128], strides = [1, 1]} : vector<4x128xf32> to vector<1x128xf32>
    %62 = vector.extract_strided_slice %59 {offsets = [2, 0], sizes = [1, 128], strides = [1, 1]} : vector<4x128xf32> to vector<1x128xf32>
    %63 = vector.extract_strided_slice %59 {offsets = [3, 0], sizes = [1, 128], strides = [1, 1]} : vector<4x128xf32> to vector<1x128xf32>
    %cst_13 = arith.constant 5.000000e-01 : f32
    %64 = vector.broadcast %cst_13 : f32 to vector<1x128xf32>
    %65 = arith.mulf %64, %62 : vector<1x128xf32>
    %66 = arith.subf %60, %65 : vector<1x128xf32>
    %cst_14 = arith.constant 5.000000e-01 : f32
    %67 = vector.broadcast %cst_14 : f32 to vector<1x128xf32>
    %68 = arith.mulf %67, %63 : vector<1x128xf32>
    %69 = arith.subf %61, %68 : vector<1x128xf32>
    %cst_15 = arith.constant 5.000000e-01 : f32
    %70 = vector.broadcast %cst_15 : f32 to vector<1x128xf32>
    %71 = arith.mulf %70, %62 : vector<1x128xf32>
    %72 = arith.addf %60, %71 : vector<1x128xf32>
    %cst_16 = arith.constant 5.000000e-01 : f32
    %73 = vector.broadcast %cst_16 : f32 to vector<1x128xf32>
    %74 = arith.mulf %73, %63 : vector<1x128xf32>
    %75 = arith.addf %61, %74 : vector<1x128xf32>
    %76 = arith.subf %72, %66 : vector<1x128xf32>
    %77 = arith.subf %75, %69 : vector<1x128xf32>
    %78 = arith.mulf %76, %77 : vector<1x128xf32>
    %79 = math.absf %78 : vector<1x128xf32>
    %80 = arith.minimumf %72, %19 : vector<1x128xf32>
    %81 = arith.maximumf %66, %13 : vector<1x128xf32>
    %82 = arith.subf %80, %81 : vector<1x128xf32>
    %cst_17 = arith.constant 0.000000e+00 : f32
    %83 = vector.broadcast %cst_17 : f32 to vector<1x128xf32>
    %84 = arith.maximumf %82, %83 : vector<1x128xf32>
    %85 = arith.minimumf %75, %22 : vector<1x128xf32>
    %86 = arith.maximumf %69, %16 : vector<1x128xf32>
    %87 = arith.subf %85, %86 : vector<1x128xf32>
    %cst_18 = arith.constant 0.000000e+00 : f32
    %88 = vector.broadcast %cst_18 : f32 to vector<1x128xf32>
    %89 = arith.maximumf %87, %88 : vector<1x128xf32>
    %90 = arith.mulf %84, %89 : vector<1x128xf32>
    %91 = arith.addf %47, %26 : vector<1x128xf32>
    %92 = arith.subf %91, %58 : vector<1x128xf32>
    %cst_19 = arith.constant 9.99999997E-7 : f32
    %93 = vector.broadcast %cst_19 : f32 to vector<1x128xf32>
    %94 = arith.addf %92, %93 : vector<1x128xf32>
    %95 = arith.addf %79, %26 : vector<1x128xf32>
    %96 = arith.subf %95, %90 : vector<1x128xf32>
    %cst_20 = arith.constant 9.99999997E-7 : f32
    %97 = vector.broadcast %cst_20 : f32 to vector<1x128xf32>
    %98 = arith.addf %96, %97 : vector<1x128xf32>
    %99 = arith.mulf %90, %94 : vector<1x128xf32>
    %100 = arith.mulf %58, %98 : vector<1x128xf32>
    %101 = arith.cmpf ogt, %99, %100 : vector<1x128xf32>
    %102 = arith.extui %101 : vector<1x128xi1> to vector<1x128xi32>
    %103 = arith.sitofp %102 : vector<1x128xi32> to vector<1x128xf32>
    %104 = vector.extract_strided_slice %3 {offsets = [28, 0], sizes = [4, 128], strides = [1, 1]} : vector<32x128xf32> to vector<4x128xf32>
    %105 = vector.broadcast %103 : vector<1x128xf32> to vector<4x128xf32>
    %106 = arith.mulf %105, %104 : vector<4x128xf32>
    %cst_21 = arith.constant 1.000000e+00 : f32
    %107 = vector.broadcast %cst_21 : f32 to vector<1x128xf32>
    %108 = arith.subf %107, %103 : vector<1x128xf32>
    %109 = vector.extract_strided_slice %3 {offsets = [24, 0], sizes = [4, 128], strides = [1, 1]} : vector<32x128xf32> to vector<4x128xf32>
    %110 = vector.broadcast %108 : vector<1x128xf32> to vector<4x128xf32>
    %111 = arith.mulf %110, %109 : vector<4x128xf32>
    %112 = arith.addf %106, %111 : vector<4x128xf32>
    %113 = vector.broadcast %5 : vector<1x128xf32> to vector<4x128xf32>
    %114 = arith.mulf %113, %112 : vector<4x128xf32>
    %115 = vector.extract_strided_slice %4 {offsets = [24, 0], sizes = [4, 128], strides = [1, 1]} : vector<32x128xf32> to vector<4x128xf32>
    %116 = vector.broadcast %5 : vector<1x128xf32> to vector<4x128xf32>
    %117 = arith.mulf %116, %115 : vector<4x128xf32>
    %118 = vector.extract_strided_slice %114 {offsets = [0, 0], sizes = [2, 128], strides = [1, 1]} : vector<4x128xf32> to vector<2x128xf32>
    %119 = vector.extract_strided_slice %117 {offsets = [0, 0], sizes = [2, 128], strides = [1, 1]} : vector<4x128xf32> to vector<2x128xf32>
    %120 = arith.subf %118, %119 : vector<2x128xf32>
    %121 = vector.extract_strided_slice %114 {offsets = [2, 0], sizes = [2, 128], strides = [1, 1]} : vector<4x128xf32> to vector<2x128xf32>
    %cst_22 = arith.constant 0.000000e+00 : f32
    %122 = vector.broadcast %cst_22 : f32 to vector<2x128xf32>
    %123 = arith.cmpf ogt, %121, %122 : vector<2x128xf32>
    %cst_23 = arith.constant 0.000000e+00 : f32
    %124 = vector.broadcast %cst_23 : f32 to vector<2x128xf32>
    %125 = arith.cmpf olt, %121, %124 : vector<2x128xf32>
    %cst_24 = arith.constant -1.000000e+00 : f32
    %cst_25 = arith.constant 0.000000e+00 : f32
    %126 = vector.broadcast %cst_24 : f32 to vector<2x128xf32>
    %127 = vector.broadcast %cst_25 : f32 to vector<2x128xf32>
    %128 = arith.select %125, %126, %127 : vector<2x128xi1>, vector<2x128xf32>
    %cst_26 = arith.constant 1.000000e+00 : f32
    %129 = vector.broadcast %cst_26 : f32 to vector<2x128xf32>
    %130 = arith.select %123, %129, %128 : vector<2x128xi1>, vector<2x128xf32>
    %131 = vector.extract_strided_slice %114 {offsets = [2, 0], sizes = [2, 128], strides = [1, 1]} : vector<4x128xf32> to vector<2x128xf32>
    %cst_27 = arith.constant 9.99999997E-7 : f32
    %132 = vector.broadcast %cst_27 : f32 to vector<2x128xf32>
    %133 = arith.addf %131, %132 : vector<2x128xf32>
    %134 = math.absf %133 : vector<2x128xf32>
    %135 = math.sqrt %134 : vector<2x128xf32>
    %136 = arith.mulf %130, %135 : vector<2x128xf32>
    %137 = vector.extract_strided_slice %117 {offsets = [2, 0], sizes = [2, 128], strides = [1, 1]} : vector<4x128xf32> to vector<2x128xf32>
    %138 = math.sqrt %137 : vector<2x128xf32>
    %139 = arith.subf %136, %138 : vector<2x128xf32>
    %140 = vector.extract_strided_slice %3 {offsets = [21, 0], sizes = [1, 128], strides = [1, 1]} : vector<32x128xf32> to vector<1x128xf32>
    %141 = arith.mulf %103, %140 : vector<1x128xf32>
    %cst_28 = arith.constant 1.000000e+00 : f32
    %142 = vector.broadcast %cst_28 : f32 to vector<1x128xf32>
    %143 = arith.subf %142, %103 : vector<1x128xf32>
    %144 = vector.extract_strided_slice %3 {offsets = [20, 0], sizes = [1, 128], strides = [1, 1]} : vector<32x128xf32> to vector<1x128xf32>
    %145 = arith.mulf %143, %144 : vector<1x128xf32>
    %146 = arith.addf %141, %145 : vector<1x128xf32>
    %147 = vector.extract_strided_slice %4 {offsets = [20, 0], sizes = [1, 128], strides = [1, 1]} : vector<32x128xf32> to vector<1x128xf32>
    %148 = arith.subf %146, %147 : vector<1x128xf32>
    %149 = arith.mulf %5, %148 : vector<1x128xf32>
    %150 = vector.extract_strided_slice %3 {offsets = [0, 0], sizes = [20, 128], strides = [1, 1]} : vector<32x128xf32> to vector<20x128xf32>
    %151 = vector.extract_strided_slice %4 {offsets = [0, 0], sizes = [20, 128], strides = [1, 1]} : vector<32x128xf32> to vector<20x128xf32>
    %152 = arith.subf %150, %151 : vector<20x128xf32>
    %153 = vector.broadcast %5 : vector<1x128xf32> to vector<20x128xf32>
    %154 = arith.mulf %153, %152 : vector<20x128xf32>
    %c0_29 = arith.constant 0 : index
    %c0_30 = arith.constant 0 : index
    %155 = vector.load %arg4[%c0_29, %c0_30] : memref<32x128xf32, #tpu.memory_space<vmem>>, vector<20x128xf32>
    %156 = arith.mulf %154, %154 : vector<20x128xf32>
    %157 = arith.addf %155, %156 : vector<20x128xf32>
    %c0_31 = arith.constant 0 : index
    %c0_32 = arith.constant 0 : index
    %158 = vector.load %arg4[%c0_31, %c0_32] : memref<32x128xf32, #tpu.memory_space<vmem>>, vector<20x128xf32>
    tpu.vector_store %arg4[%c0_31, %c0_32], %157 {strides = array<i32>} : memref<32x128xf32, #tpu.memory_space<vmem>>, vector<20x128xf32>,
    %c20 = arith.constant 20 : index
    %c0_33 = arith.constant 0 : index
    %159 = vector.load %arg4[%c20, %c0_33] : memref<32x128xf32, #tpu.memory_space<vmem>>, vector<1x128xf32>
    %160 = arith.mulf %149, %149 : vector<1x128xf32>
    %161 = arith.addf %159, %160 : vector<1x128xf32>
    %c20_34 = arith.constant 20 : index
    %c0_35 = arith.constant 0 : index
    %162 = vector.load %arg4[%c20_34, %c0_35] : memref<32x128xf32, #tpu.memory_space<vmem>>, vector<1x128xf32>
    tpu.vector_store %arg4[%c20_34, %c0_35], %161 {strides = array<i32>} : memref<32x128xf32, #tpu.memory_space<vmem>>, vector<1x128xf32>,
    %c21 = arith.constant 21 : index
    %c0_36 = arith.constant 0 : index
    %163 = vector.load %arg4[%c21, %c0_36] : memref<32x128xf32, #tpu.memory_space<vmem>>, vector<2x128xf32>
    %164 = arith.mulf %120, %120 : vector<2x128xf32>
    %cst_37 = arith.constant 5.000000e+00 : f32
    %165 = vector.broadcast %cst_37 : f32 to vector<2x128xf32>
    %166 = arith.mulf %165, %164 : vector<2x128xf32>
    %167 = arith.addf %163, %166 : vector<2x128xf32>
    %c21_38 = arith.constant 21 : index
    %c0_39 = arith.constant 0 : index
    %168 = vector.load %arg4[%c21_38, %c0_39] : memref<32x128xf32, #tpu.memory_space<vmem>>, vector<2x128xf32>
    tpu.vector_store %arg4[%c21_38, %c0_39], %167 {strides = array<i32>} : memref<32x128xf32, #tpu.memory_space<vmem>>, vector<2x128xf32>,
    %c23 = arith.constant 23 : index
    %c0_40 = arith.constant 0 : index
    %169 = vector.load %arg4[%c23, %c0_40] : memref<32x128xf32, #tpu.memory_space<vmem>>, vector<2x128xf32>
    %170 = arith.mulf %139, %139 : vector<2x128xf32>
    %cst_41 = arith.constant 5.000000e+00 : f32
    %171 = vector.broadcast %cst_41 : f32 to vector<2x128xf32>
    %172 = arith.mulf %171, %170 : vector<2x128xf32>
    %173 = arith.addf %169, %172 : vector<2x128xf32>
    %c23_42 = arith.constant 23 : index
    %c0_43 = arith.constant 0 : index
    %174 = vector.load %arg4[%c23_42, %c0_43] : memref<32x128xf32, #tpu.memory_space<vmem>>, vector<2x128xf32>
    tpu.vector_store %arg4[%c23_42, %c0_43], %173 {strides = array<i32>} : memref<32x128xf32, #tpu.memory_space<vmem>>, vector<2x128xf32>,
    %c0_i32_44 = arith.constant 0 : i32
    %175 = arith.cmpi eq, %arg0, %c0_i32_44 : i32
    %176 = arith.extui %175 : i1 to i32
    %c0_i32_45 = arith.constant 0 : i32
    %177 = arith.cmpi ne, %176, %c0_i32_45 : i32
    scf.if %177 {
      %c0_46 = arith.constant 0 : index
      %c0_47 = arith.constant 0 : index
      %178 = vector.load %arg4[%c0_46, %c0_47] : memref<32x128xf32, #tpu.memory_space<vmem>>, vector<32x128xf32>
      %179 = vector.shape_cast %178 : vector<32x128xf32> to vector<1x32x128xf32>
      %cst_48 = arith.constant dense<0.000000e+00> : vector<1xf32>
      %180 = vector.multi_reduction <add>, %179, %cst_48 [1, 2] : vector<1x32x128xf32> to vector<1xf32>
      %181 = vector.shape_cast %180 : vector<1xf32> to vector<1x1x1xf32>
      %182 = vector.extract %181[0, 0, 0] : f32 from vector<1x1x1xf32>
      %c0_49 = arith.constant 0 : index
      %c0_50 = arith.constant 0 : index
      %183 = memref.load %arg3[%c0_49, %c0_50] : memref<1x1xf32, #tpu.memory_space<smem>>
      memref.store %182, %arg3[%c0_49, %c0_50] : memref<1x1xf32, #tpu.memory_space<smem>>
    } else {
    }
    return
  }
  func.func @transform_0(%arg0: i32) -> (i32, i32) {
    %c0_i32 = arith.constant 0 : i32
    %c0_i32_0 = arith.constant 0 : i32
    return %c0_i32, %arg0 : i32, i32
  }
  func.func @transform_1(%arg0: i32) -> (i32, i32) {
    %c0_i32 = arith.constant 0 : i32
    %c0_i32_0 = arith.constant 0 : i32
    return %c0_i32, %arg0 : i32, i32
  }
  func.func @transform_2(%arg0: i32) -> (i32, i32) {
    %c0_i32 = arith.constant 0 : i32
    %c0_i32_0 = arith.constant 0 : i32
    %c0_i32_1 = arith.constant 0 : i32
    return %c0_i32, %c0_i32_0 : i32, i32
  }
}

</mosaic_0001>

<llo_original>
// kernel: tpu_custom_call.1
$region0: #{tpu_custom_call.1}
  #allocation0 [shape = 'u32[]', space=smem, size = 0x4, offset = 0x4, fixed_abs, tag = 'smem constant byte address 0x4 - core index']
  #allocation1 [shape = 'u32[144,128]{1,0:T(1,128)}', space=vmem, size = 0x12000, scoped, tag = 'internal scratch']
  #allocation2 [shape = 'f32[32,128]{1,0:T(8,128)}', space=vmem, size = 0x4000, scoped, tag = 'scratch operand']
  %s0 = inlined_call_operand.hbm [shape: f32[32,128], index: 0, kind: input, shape index: {}]
  %s1 = inlined_call_operand.hbm [shape: f32[32,128], index: 1, kind: input, shape index: {}]
  %s2 = inlined_call_operand.hbm [shape: f32[1,1], index: 2, kind: output, shape index: {}]
  %s3 = sld [smem:[#allocation0]]
  $region34: #{tpu_custom_call.1} parent=0
    _
  %s5 = ssub.s32 1, %s3
  %s6 = scalar_select 0, %s5, %s3
  $region1: #{tpu_custom_call.1} parent=0
    #allocation3 [shape = 'u8[16384]{0}', space=vmem, size = 0x4000, scoped, tag = 'input window, operand 0, single buffered']
    #allocation4 [shape = 's32[1]{0}', space=sflag, size = 0x4, scoped, tag = 'scoped memory for tpu_custom_call.1']
    #allocation5 [shape = 's32[1]{0}', space=sflag, size = 0x4, scoped, tag = 'scoped memory for tpu_custom_call.1']
    #allocation6 [shape = 'u8[16384]{0}', space=vmem, size = 0x4000, scoped, tag = 'input window, operand 1, single buffered']
    #allocation7 [shape = 's32[1]{0}', space=sflag, size = 0x4, scoped, tag = 'scoped memory for tpu_custom_call.1']
    #allocation8 [shape = 'u8[512]{0}', space=smem, size = 0x200, scoped, tag = 'output window, operand 0, single buffered']
    %7 = vsyncpa [#allocation4], 0
    %8 = vsyncpa [#allocation7], 0
    %9 = vsyncpa [#allocation5], 0
    // Predicated region
    $region2: #{tpu_custom_call.1} parent=1 // pred_check
      _
    $region3: #{tpu_custom_call.1} parent=1 // pred_check_branch
      %11 = sbr.rel (0) target = $region5
    $region4: #{tpu_custom_call.1} parent=1 // pred_region
      %s13 = ssub.s32 512, 512
      %14 = vsyncadd [#allocation4], %s13
      %s15 = sshll.u32 [#allocation3], 4
      %s16 = int_to_ptr.vmem [resolvable:$true] %s15
      %21 = dma.hbm_to_vmem [thread:$0]  %s0, 512, %s16, [#allocation4], 128, 128, 8
    $region5: #{tpu_custom_call.1} parent=1 // pred_fallthru
      _
    // Predicated region
    $region6: #{tpu_custom_call.1} parent=1 // pred_check
      _
    $region7: #{tpu_custom_call.1} parent=1 // pred_check_branch
      %23 = sbr.rel (0) target = $region9
    $region8: #{tpu_custom_call.1} parent=1 // pred_region
      %s25 = ssub.s32 512, 512
      %26 = vsyncadd [#allocation7], %s25
      %s27 = sshll.u32 [#allocation6], 4
      %s28 = int_to_ptr.vmem [resolvable:$true] %s27
      %33 = dma.hbm_to_vmem [thread:$0]  %s1, 512, %s28, [#allocation7], 128, 128, 8
    $region9: #{tpu_custom_call.1} parent=1 // pred_fallthru
      _
    // Predicated region
    $region10: #{tpu_custom_call.1} parent=1 // pred_check
      _
    $region11: #{tpu_custom_call.1} parent=1 // pred_check_branch
      %35 = sbr.rel (0) target = $region13
    $region12: #{tpu_custom_call.1} parent=1 // pred_region
      %36 = dma.done [#allocation4], 512
    $region13: #{tpu_custom_call.1} parent=1 // pred_fallthru
      _
    // Predicated region
    $region14: #{tpu_custom_call.1} parent=1 // pred_check
      _
    $region15: #{tpu_custom_call.1} parent=1 // pred_check_branch
      %38 = sbr.rel (0) target = $region17
    $region16: #{tpu_custom_call.1} parent=1 // pred_region
      %39 = dma.done [#allocation7], 512
    $region17: #{tpu_custom_call.1} parent=1 // pred_fallthru
      _
    %p40 = scmp.eq.s32.totalorder 0, 0
    // Predicated region
    $region18: #{tpu_custom_call.1} parent=1 // pred_check
      %p41 = pneg %p40
    $region19: #{tpu_custom_call.1} parent=1 // pred_check_branch
      %43 = sbr.rel (%p41) target = $region21
    $region20: #{tpu_custom_call.1} parent=1 // pred_region
      %44 = vst [vmem:[#allocation2] sm:$0xff] 0.0
      %45 = vst [vmem:[#allocation2 + $0x8] sm:$0xff] 0.0
      %46 = vst [vmem:[#allocation2 + $0x10] sm:$0xff] 0.0
      %47 = vst [vmem:[#allocation2 + $0x18] sm:$0xff] 0.0
    $region21: #{tpu_custom_call.1} parent=1 // pred_fallthru
      _
    %v48 = vld [vmem:[#allocation3] sm:$0xff]
    %v49 = vld [vmem:[#allocation3 + $0x8] sm:$0xff]
    %v50 = vld [vmem:[#allocation3 + $0x10] sm:$0xff]
    %v51 = vld [vmem:[#allocation3 + $0x18] sm:$0xff]
    %v52 = vld [vmem:[#allocation6] sm:$0xff]
    %v53 = vld [vmem:[#allocation6 + $0x8] sm:$0xff]
    %v54 = vld [vmem:[#allocation6 + $0x10] sm:$0xff]
    %v55 = vld [vmem:[#allocation6 + $0x18] sm:$0xff]
    %v56 = vmul.f32 %v55, 0.5
    %v58 = vrot.slane %v56, 2
    %v60 = vsub.f32 %v55, %v58
    %v61 = vadd.f32 %v55, %v58
    %v62 = vsub.f32 %v61, %v60
    %v64 = vrot.slane %v62, 1
    %v66 = vmul.f32 %v62, %v64
    %v67 = vand.u32 2147483647, %v66
    %v68 = vmul.f32 %v51, 0.5
    %v70 = vrot.slane %v68, 2
    %v72 = vsub.f32 %v51, %v70
    %v73 = vadd.f32 %v51, %v70
    %v74 = vsub.f32 %v73, %v72
    %v76 = vrot.slane %v74, 1
    %v78 = vmul.f32 %v74, %v76
    %v79 = vand.u32 2147483647, %v78
    %v80 = vmin.f32 %v73, %v61
    %v81 = vmax.f32 %v72, %v60
    %v82 = vsub.f32 %v80, %v81
    %v83 = vmax.f32 %v82, 0.0
    %v85 = vrot.slane %v83, 1
    %v87 = vmul.f32 %v83, %v85
    %v89 = vrot.slane %v61, 4
    %v91 = vmin.f32 %v73, %v89
    %v93 = vrot.slane %v60, 4
    %v95 = vmax.f32 %v72, %v93
    %v96 = vsub.f32 %v91, %v95
    %v97 = vmax.f32 %v96, 0.0
    %v99 = vrot.slane %v97, 1
    %v101 = vmul.f32 %v97, %v99
    %v102 = vadd.f32 %v79, %v67
    %v103 = vsub.f32 %v102, %v87
    %v104 = vadd.f32 %v103, 1e-06
    %v106 = vrot.slane %v67, 4
    %v108 = vadd.f32 %v79, %v106
    %v109 = vsub.f32 %v108, %v101
    %v110 = vadd.f32 %v109, 1e-06
    %v112 = vrot.slane %v104, 4
    %v114 = vmul.f32 %v101, %v112
    %v116 = vrot.slane %v110, 4
    %v118 = vmul.f32 %v87, %v116
    %v120 = vrot.slane %v118, 4
    %vm122 = vcmp.gt.f32.partialorder %v114, %v120
    %v123 = vsel %vm122, 1, 0
    %v124 = vcvt.s32.f32 %v123
    %v125 = vlaneseq
    %v126 = vshrl.u32 %v125, 7
    %v127 = vsub.s32 4, %v126
    %v128 = vrot.slane %v124, %v127
    %v129 = vmul.f32 %v128, %v51
    %v130 = vsub.f32 1.0, %v124
    %v131 = vlaneseq
    %v132 = vshrl.u32 %v131, 7
    %v133 = vsub.s32 4, %v132
    %v134 = vrot.slane %v130, %v133
    %v135 = vmul.f32 %v134, %v51
    %v137 = vrot.slane %v135, 4
    %v139 = vadd.f32 %v129, %v137
    %v140 = vlaneseq
    %v141 = vshrl.u32 %v140, 7
    %v142 = vsub.s32 4, %v141
    %v143 = vrot.slane %v54, %v142
    %v144 = vmul.f32 %v143, %v139
    %v145 = vmul.f32 %v143, %v55
    %v147 = vrot.slane %v145, 4
    %v149 = vsub.f32 %v144, %v147
    %vm150 = vcmp.gt.f32.partialorder %v144, 0.0
    %vm151 = vcmp.lt.f32.partialorder %v144, 0.0
    %v152 = vsel %vm151, -1.0, 0.0
    %v153 = vsel %vm150, 1.0, %v152
    %v154 = vadd.f32 %v144, 1e-06
    %v155 = vand.u32 2147483647, %v154
    %v156 = vrsqrt.pop %v155
    %v157 = vmul.f32 %v155, %v156
    %vm158 = vcmp.eq.f32.partialorder %v155, inf
    %v159 = vsel %vm158, %v155, %v157
    %vm160 = vcmp.eq.f32.partialorder %v155, 0.0
    %v161 = vand.u32 %v155, 2147483648
    %v162 = vsel %vm160, %v161, %v159
    %v163 = vmul.f32 %v153, %v162
    %v164 = vrsqrt.pop %v145
    %v165 = vmul.f32 %v145, %v164
    %vm166 = vcmp.eq.f32.partialorder %v145, inf
    %v167 = vsel %vm166, %v145, %v165
    %vm168 = vcmp.eq.f32.partialorder %v145, 0.0
    %v169 = vand.u32 %v145, 2147483648
    %v170 = vsel %vm168, %v169, %v167
    %v172 = vrot.slane %v170, 4
    %v174 = vsub.f32 %v163, %v172
    %v176 = vrot.slane %v50, 1
    %v178 = vmul.f32 %v124, %v176
    %v179 = vmul.f32 %v130, %v50
    %v180 = vadd.f32 %v178, %v179
    %v181 = vsub.f32 %v180, %v54
    %v182 = vmul.f32 %v54, %v181
    %v183 = vsub.f32 %v48, %v52
    %v184 = vsub.f32 %v49, %v53
    %v185 = vsub.f32 %v50, %v54
    %v186 = vmul.f32 %v143, %v183
    %v187 = vmul.f32 %v143, %v184
    %v188 = vmul.f32 %v143, %v185
    %v189 = vld [vmem:[#allocation2] sm:$0xff]
    %v190 = vld [vmem:[#allocation2 + $0x8] sm:$0xff]
    %v191 = vld [vmem:[#allocation2 + $0x10] sm:$0xf]
    %v192 = vmul.f32 %v186, %v186
    %v193 = vmul.f32 %v187, %v187
    %v194 = vmul.f32 %v188, %v188
    %v195 = vadd.f32 %v189, %v192
    %v196 = vadd.f32 %v190, %v193
    %v197 = vadd.f32 %v191, %v194
    %198 = vst [vmem:[#allocation2] sm:$0xff] %v195
    %199 = vst [vmem:[#allocation2 + $0x8] sm:$0xff] %v196
    %200 = vst [vmem:[#allocation2 + $0x10] sm:$0xf] %v197
    %v201 = vld [vmem:[#allocation2 + $0x14] sm:$0x1]
    %v202 = vmul.f32 %v182, %v182
    %v204 = vrot.slane %v202, 4
    %v206 = vadd.f32 %v201, %v204
    %207 = vst [vmem:[#allocation2 + $0x14] sm:$0x1] %v206
    %v208 = vld [vmem:[#allocation2 + $0x15] sm:$0x3]
    %v209 = vmul.f32 %v149, %v149
    %v210 = vmul.f32 %v209, 5.0
    %v212 = vrot.slane %v210, 4
    %v214 = vadd.f32 %v208, %v212
    %215 = vst [vmem:[#allocation2 + $0x15] sm:$0x3] %v214
    %v216 = vld [vmem:[#allocation2 + $0x17] sm:$0x3]
    %v217 = vmul.f32 %v174, %v174
    %v218 = vmul.f32 %v217, 5.0
    %v220 = vrot.slane %v218, 6
    %v222 = vadd.f32 %v216, %v220
    %223 = vst [vmem:[#allocation2 + $0x17] sm:$0x3] %v222
    // Predicated region
    $region22: #{tpu_custom_call.1} parent=1 // pred_check
      %p224 = pneg %p40
    $region23: #{tpu_custom_call.1} parent=1 // pred_check_branch
      %226 = sbr.rel (%p224) target = $region25
    $region24: #{tpu_custom_call.1} parent=1 // pred_region
      %v227 = vld [vmem:[#allocation2] sm:$0xff]
      %v228 = vld [vmem:[#allocation2 + $0x8] sm:$0xff]
      %v229 = vld [vmem:[#allocation2 + $0x10] sm:$0xff]
      %v230 = vld [vmem:[#allocation2 + $0x18] sm:$0xff]
      %v231 = vadd.f32 %v227, %v228
      %v232 = vadd.f32 %v231, %v229
      %v233 = vadd.f32 %v232, %v230
      %234 = vadd.xlane.f32.xlu0 %v233
      %v235 = vpop.xlane.xlu0 %234
      %v236 = vrot.slane %v235, 4
      %v237 = vadd.f32 %v235, %v236
      %v238 = vrot.slane %v237, 2
      %v239 = vadd.f32 %v237, %v238
      %v240 = vrot.slane %v239, 1
      %v241 = vadd.f32 %v239, %v240
      %s242 = vtos %v241
      %s243 = scalar_lea.smem [#allocation8], 0
      %244 = sst [smem:[%s243]] %s242
    $region25: #{tpu_custom_call.1} parent=1 // pred_fallthru
      _
    // Predicated region
    $region26: #{tpu_custom_call.1} parent=1 // pred_check
      _
    $region27: #{tpu_custom_call.1} parent=1 // pred_check_branch
      %246 = sbr.rel (0) target = $region29
    $region28: #{tpu_custom_call.1} parent=1 // pred_region
      %s248 = ssub.s32 16, 16
      %249 = vsyncadd [#allocation5], %s248
      %252 = dma.smem_to_hbm [#allocation8], 16, %s2, [#allocation5]
    $region29: #{tpu_custom_call.1} parent=1 // pred_fallthru
      _
    // Predicated region
    $region30: #{tpu_custom_call.1} parent=1 // pred_check
      _
    $region31: #{tpu_custom_call.1} parent=1 // pred_check_branch
      %254 = sbr.rel (0) target = $region33
    $region32: #{tpu_custom_call.1} parent=1 // pred_region
      %255 = dma.done [#allocation5], 16
    $region33: #{tpu_custom_call.1} parent=1 // pred_fallthru
      _
    %256 = sfence
    %257 = vsyncpa [#allocation4], 1
    %258 = vsyncpa [#allocation7], 1
    %259 = vsyncpa [#allocation5], 1

</llo_original>
